<compile_context>
chip_gen: v5e
topology: v5e:2x2
jax: 0.10.0
libtpu: 0.0.40
codegen_flags: <defaults>
</compile_context>

<pallas_src>
import math
import functools

import jax
import jax.numpy as jnp
from jax.experimental import pallas as pl
from jax.experimental.pallas import tpu as pltpu


LANE = 128


def _round_up(n, m):
    return (n + m - 1) // m * m


def _pad_to(a, shape):
    pads = [(0, t - s) for s, t in zip(a.shape, shape)]
    return jnp.pad(a, pads)


def _pick_batch_block(b, max_bt=8):
    for bt in range(min(b, max_bt), 0, -1):
        if b % bt == 0:
            return bt
    return 1


def _make_kernel(n_ctx, n_tgt, bt):
    n_all = n_ctx + n_tgt

    def kernel(x_ref, v_ref,
               w1_ref, b1_ref, w2_ref, b2_ref,
               w3k_ref, b3k_ref, w3q_ref, b3q_ref,
               wv_ref, bv_ref,
               o_ref):
        x_dim = x_ref.shape[-1]
        h_pad = w1_ref.shape[-1]
        e_pad = w3k_ref.shape[-1]
        e_in = v_ref.shape[-1]

        # ---- shared batch_mlp, fused over (ctx ++ tgt) rows of all Bt batch elems ----
        x2 = x_ref[...].reshape(bt * n_all, x_dim)
        h = jnp.maximum(
            jnp.dot(x2, w1_ref[...], preferred_element_type=jnp.float32) + b1_ref[...], 0.0)
        h = jnp.maximum(
            jnp.dot(h, w2_ref[...], preferred_element_type=jnp.float32) + b2_ref[...], 0.0)
        h = h.reshape(bt, n_all, h_pad)

        # ---- last MLP layer with the MHA q/k in-projections (and q-scale) folded in ----
        h_ctx = h[:, :n_ctx, :].reshape(bt * n_ctx, h_pad)
        h_tgt = h[:, n_ctx:, :].reshape(bt * n_tgt, h_pad)
        kp = (jnp.dot(h_ctx, w3k_ref[...], preferred_element_type=jnp.float32)
              + b3k_ref[...]).reshape(bt, n_ctx, e_pad)
        qp = (jnp.dot(h_tgt, w3q_ref[...], preferred_element_type=jnp.float32)
              + b3q_ref[...]).reshape(bt, n_tgt, e_pad)          # already scaled by 1/sqrt(E)

        # ---- value projection with the MHA out-projection folded in ----
        v2 = v_ref[...].reshape(bt * n_ctx, e_in)
        vp = (jnp.dot(v2, wv_ref[...], preferred_element_type=jnp.float32)
              + bv_ref[...]).reshape(bt, n_ctx, e_pad)

        # ---- attention: contract last dims directly (no kp.T materialization) ----
        scores = jnp.einsum('bqe,bke->bqk', qp, kp,
                            preferred_element_type=jnp.float32)   # (bt, n_tgt, n_ctx)
        m = jnp.max(scores, axis=-1, keepdims=True)
        p = jnp.exp(scores - m)
        denom = jnp.sum(p, axis=-1, keepdims=True)
        ctx = jnp.einsum('bqk,bke->bqe', p, vp,
                         preferred_element_type=jnp.float32)      # (bt, n_tgt, e_pad)
        # normalize once, after the PV matmul; approx=True -> EUP vrcp (free slot)
        o_ref[...] = (ctx * pl.reciprocal(denom, approx=True)).astype(o_ref.dtype)

    return kernel


def attention_aggregator(r_i, x_context, x_target, params, *, batch_block=None):
    """Pallas implementation of AttentionAggregator.forward.

    r_i:       (B, N_ctx, E, 1) or (B, N_ctx, E)
    x_context: (B, N_ctx, x_dim)
    x_target:  (B, N_tgt, x_dim)
    returns:   (B, N_tgt, E)
    """
    v = r_i
    if v.ndim == 4 and v.shape[-1] == 1:
        v = jnp.squeeze(v, -1)                     # torch .squeeze(-1)
    v = v.astype(jnp.float32)

    B, n_ctx, x_dim = x_context.shape
    _, n_tgt, _ = x_target.shape
    E = v.shape[-1]
    h_dim = params["w1"].shape[1]

    h_pad = _round_up(h_dim, LANE)
    e_pad = _round_up(E, LANE)
    scale = 1.0 / math.sqrt(E)

    # ---- algebraic folding (done once, outside the kernel) ----
    w3q = (params["w3"] @ params["wq"]) * scale
    b3q = (params["b3"] @ params["wq"] + params["bq"]) * scale
    w3k = params["w3"] @ params["wk"]
    b3k = params["b3"] @ params["wk"] + params["bk"]
    wvo = params["wv"] @ params["wo"]
    bvo = params["bv"] @ params["wo"] + params["bo"]   # bo folded: softmax rows sum to 1

    # ---- zero-pad lane dims (h, E) to 128 multiples -> lane-dense matmuls & stores ----
    w1 = _pad_to(params["w1"], (x_dim, h_pad))
    b1 = _pad_to(params["b1"], (1, h_pad))
    w2 = _pad_to(params["w2"], (h_pad, h_pad))
    b2 = _pad_to(params["b2"], (1, h_pad))
    w3k = _pad_to(w3k, (h_pad, e_pad))
    b3k = _pad_to(b3k, (1, e_pad))
    w3q = _pad_to(w3q, (h_pad, e_pad))
    b3q = _pad_to(b3q, (1, e_pad))
    wvo = _pad_to(wvo, (E, e_pad))
    bvo = _pad_to(bvo, (1, e_pad))

    weights = [w1, b1, w2, b2, w3k, b3k, w3q, b3q, wvo, bvo]
    weights = [w.astype(jnp.float32) for w in weights]

    # ---- fuse ctx/tgt rows so the shared MLP runs once per grid step ----
    x_all = jnp.concatenate([x_context, x_target], axis=1).astype(jnp.float32)
    n_all = n_ctx + n_tgt

    # ---- several batch elements per grid step (amortize per-step overhead) ----
    bt = batch_block if batch_block is not None else _pick_batch_block(B)
    assert B % bt == 0, "batch_block must divide batch size"

    def bcast_spec(shape):
        nd = len(shape)
        return pl.BlockSpec(shape, lambda i, _nd=nd: (0,) * _nd)

    in_specs = [
        pl.BlockSpec((bt, n_all, x_dim), lambda i: (i, 0, 0)),
        pl.BlockSpec((bt, n_ctx, E), lambda i: (i, 0, 0)),
    ] + [bcast_spec(w.shape) for w in weights]

    out_spec = pl.BlockSpec((bt, n_tgt, e_pad), lambda i: (i, 0, 0))

    kernel = _make_kernel(n_ctx, n_tgt, bt)

    out_padded = pl.pallas_call(
        kernel,
        out_shape=jax.ShapeDtypeStruct((B, n_tgt, e_pad), jnp.float32),
        grid_spec=pltpu.PrefetchScalarGridSpec(
            num_scalar_prefetch=0,
            grid=(B // bt,),
            in_specs=in_specs,
            out_specs=out_spec,
        ),
        compiler_params=pltpu.CompilerParams(
            dimension_semantics=("parallel",)),
    )(x_all, v, *weights)

    return out_padded[..., :E]


def init_params(key, x_dim, h_dim, e_dim):
    """Deterministic synthetic parameters (JAX (in, out) weight layout)."""
    keys = jax.random.split(key, 14)

    def lin(kw, kb, fan_in, fan_out):
        bound = 1.0 / math.sqrt(fan_in)
        w = jax.random.uniform(kw, (fan_in, fan_out), jnp.float32, -bound, bound)
        b = jax.random.uniform(kb, (1, fan_out), jnp.float32, -bound, bound)
        return w, b

    w1, b1 = lin(keys[0], keys[1], x_dim, h_dim)
    w2, b2 = lin(keys[2], keys[3], h_dim, h_dim)
    w3, b3 = lin(keys[4], keys[5], h_dim, e_dim)
    wq, bq = lin(keys[6], keys[7], e_dim, e_dim)
    wk, bk = lin(keys[8], keys[9], e_dim, e_dim)
    wv, bv = lin(keys[10], keys[11], e_dim, e_dim)
    wo, bo = lin(keys[12], keys[13], e_dim, e_dim)
    return dict(w1=w1, b1=b1, w2=w2, b2=b2, w3=w3, b3=b3,
                wq=wq, bq=bq, wk=wk, bk=bk, wv=wv, bv=bv, wo=wo, bo=bo)


def _reference(r_i, x_context, x_target, p):
    """Pure-JAX reference of the same forward pass (unfolded, for sanity check)."""
    v = jnp.squeeze(r_i, -1) if (r_i.ndim == 4 and r_i.shape[-1] == 1) else r_i

    def mlp(x):
        h = jax.nn.relu(x @ p["w1"] + p["b1"])
        h = jax.nn.relu(h @ p["w2"] + p["b2"])
        return h @ p["w3"] + p["b3"]

    k = mlp(x_context)
    q = mlp(x_target)
    qp = q @ p["wq"] + p["bq"]
    kp = k @ p["wk"] + p["bk"]
    vp = v @ p["wv"] + p["bv"]
    scale = 1.0 / math.sqrt(qp.shape[-1])
    scores = jnp.einsum("bqd,bkd->bqk", qp, kp) * scale
    attn = jax.nn.softmax(scores, axis=-1)
    ctx = jnp.einsum("bqk,bkd->bqd", attn, vp)
    return ctx @ p["wo"] + p["bo"]


if __name__ == "__main__":
    B, N_ctx, N_tgt = 2, 16, 8
    x_dim, h_dim, r_dim = 8, 32, 32    # output_size = r_dim = embed_dim E

    key = jax.random.PRNGKey(0)
    k_r, k_xc, k_xt, k_p = jax.random.split(key, 4)

    r_i = jax.random.normal(k_r, (B, N_ctx, r_dim, 1), jnp.float32)
    x_context = jax.random.normal(k_xc, (B, N_ctx, x_dim), jnp.float32)
    x_target = jax.random.normal(k_xt, (B, N_tgt, x_dim), jnp.float32)
    params = init_params(k_p, x_dim, h_dim, r_dim)

    out = attention_aggregator(r_i, x_context, x_target, params)
    out = jax.block_until_ready(out)

    ref = _reference(r_i, x_context, x_target, params)
    assert out.shape == (B, N_tgt, r_dim)
    # tolerance slightly loosened vs. exact-f32 because of the approximate
    # EUP reciprocal used for the softmax denominator (pl.reciprocal approx=True)
    assert jnp.allclose(out, ref, atol=2e-3, rtol=2e-3), float(jnp.max(jnp.abs(out - ref)))

    print("KERNEL_OK")
</pallas_src>

<mosaic_0001>
module attributes {stable_mosaic.version = 11 : i64} {
  func.func @kernel(%arg0: i32, %arg1: memref<2x24x8xf32, #tpu.memory_space<vmem>>, %arg2: memref<2x16x32xf32, #tpu.memory_space<vmem>>, %arg3: memref<8x128xf32, #tpu.memory_space<vmem>>, %arg4: memref<1x128xf32, #tpu.memory_space<vmem>>, %arg5: memref<128x128xf32, #tpu.memory_space<vmem>>, %arg6: memref<1x128xf32, #tpu.memory_space<vmem>>, %arg7: memref<128x128xf32, #tpu.memory_space<vmem>>, %arg8: memref<1x128xf32, #tpu.memory_space<vmem>>, %arg9: memref<128x128xf32, #tpu.memory_space<vmem>>, %arg10: memref<1x128xf32, #tpu.memory_space<vmem>>, %arg11: memref<32x128xf32, #tpu.memory_space<vmem>>, %arg12: memref<1x128xf32, #tpu.memory_space<vmem>>, %arg13: memref<2x8x128xf32, #tpu.memory_space<vmem>>) attributes {dimension_semantics = [#tpu.dimension_semantics<parallel>], iteration_bounds = array<i64: 1>, scalar_prefetch = 0 : i64, scratch_operands = 0 : i64, tpu.core_type = #tpu.core_type<tc>, window_params = [{transform_indices = @transform_0, window_bounds = array<i64: 2, 24, 8>}, {transform_indices = @transform_1, window_bounds = array<i64: 2, 16, 32>}, {pipeline_mode = #tpu.pipeline_mode<synchronous>, transform_indices = @transform_2, window_bounds = array<i64: 8, 128>}, {pipeline_mode = #tpu.pipeline_mode<synchronous>, transform_indices = @transform_3, window_bounds = array<i64: 1, 128>}, {pipeline_mode = #tpu.pipeline_mode<synchronous>, transform_indices = @transform_4, window_bounds = array<i64: 128, 128>}, {pipeline_mode = #tpu.pipeline_mode<synchronous>, transform_indices = @transform_5, window_bounds = array<i64: 1, 128>}, {pipeline_mode = #tpu.pipeline_mode<synchronous>, transform_indices = @transform_6, window_bounds = array<i64: 128, 128>}, {pipeline_mode = #tpu.pipeline_mode<synchronous>, transform_indices = @transform_7, window_bounds = array<i64: 1, 128>}, {pipeline_mode = #tpu.pipeline_mode<synchronous>, transform_indices = @transform_8, window_bounds = array<i64: 128, 128>}, {pipeline_mode = #tpu.pipeline_mode<synchronous>, transform_indices = @transform_9, window_bounds = array<i64: 1, 128>}, {pipeline_mode = #tpu.pipeline_mode<synchronous>, transform_indices = @transform_10, window_bounds = array<i64: 32, 128>}, {pipeline_mode = #tpu.pipeline_mode<synchronous>, transform_indices = @transform_11, window_bounds = array<i64: 1, 128>}, {transform_indices = @transform_12, window_bounds = array<i64: 2, 8, 128>}]} {
    %c0 = arith.constant 0 : index
    %c0_0 = arith.constant 0 : index
    %c0_1 = arith.constant 0 : index
    %0 = vector.load %arg1[%c0, %c0_0, %c0_1] : memref<2x24x8xf32, #tpu.memory_space<vmem>>, vector<2x24x8xf32>
    %1 = vector.shape_cast %0 : vector<2x24x8xf32> to vector<48x8xf32>
    %c0_2 = arith.constant 0 : index
    %c0_3 = arith.constant 0 : index
    %2 = vector.load %arg3[%c0_2, %c0_3] : memref<8x128xf32, #tpu.memory_space<vmem>>, vector<8x128xf32>
    %cst = arith.constant dense<0.000000e+00> : vector<48x128xf32>
    %3 = tpu.matmul %1, %2, %cst {dimension_numbers = #tpu.dot_dimension_numbers<[1], [0], [0], [1], [0, 0, 1, 1], [], []>} : vector<48x8xf32>, vector<8x128xf32>, vector<48x128xf32> -> vector<48x128xf32>
    %c0_4 = arith.constant 0 : index
    %c0_5 = arith.constant 0 : index
    %4 = vector.load %arg4[%c0_4, %c0_5] : memref<1x128xf32, #tpu.memory_space<vmem>>, vector<1x128xf32>
    %5 = vector.broadcast %4 : vector<1x128xf32> to vector<48x128xf32>
    %6 = arith.addf %3, %5 : vector<48x128xf32>
    %cst_6 = arith.constant 0.000000e+00 : f32
    %7 = vector.broadcast %cst_6 : f32 to vector<48x128xf32>
    %8 = arith.maximumf %6, %7 : vector<48x128xf32>
    %c0_7 = arith.constant 0 : index
    %c0_8 = arith.constant 0 : index
    %9 = vector.load %arg5[%c0_7, %c0_8] : memref<128x128xf32, #tpu.memory_space<vmem>>, vector<128x128xf32>
    %cst_9 = arith.constant dense<0.000000e+00> : vector<48x128xf32>
    %10 = tpu.matmul %8, %9, %cst_9 {dimension_numbers = #tpu.dot_dimension_numbers<[1], [0], [0], [1], [0, 0, 1, 1], [], []>} : vector<48x128xf32>, vector<128x128xf32>, vector<48x128xf32> -> vector<48x128xf32>
    %c0_10 = arith.constant 0 : index
    %c0_11 = arith.constant 0 : index
    %11 = vector.load %arg6[%c0_10, %c0_11] : memref<1x128xf32, #tpu.memory_space<vmem>>, vector<1x128xf32>
    %12 = vector.broadcast %11 : vector<1x128xf32> to vector<48x128xf32>
    %13 = arith.addf %10, %12 : vector<48x128xf32>
    %cst_12 = arith.constant 0.000000e+00 : f32
    %14 = vector.broadcast %cst_12 : f32 to vector<48x128xf32>
    %15 = arith.maximumf %13, %14 : vector<48x128xf32>
    %16 = vector.shape_cast %15 : vector<48x128xf32> to vector<2x24x128xf32>
    %17 = vector.extract_strided_slice %16 {offsets = [0, 0, 0], sizes = [2, 16, 128], strides = [1, 1, 1]} : vector<2x24x128xf32> to vector<2x16x128xf32>
    %18 = vector.shape_cast %17 : vector<2x16x128xf32> to vector<32x128xf32>
    %19 = vector.extract_strided_slice %16 {offsets = [0, 16, 0], sizes = [2, 8, 128], strides = [1, 1, 1]} : vector<2x24x128xf32> to vector<2x8x128xf32>
    %20 = vector.shape_cast %19 : vector<2x8x128xf32> to vector<16x128xf32>
    %c0_13 = arith.constant 0 : index
    %c0_14 = arith.constant 0 : index
    %21 = vector.load %arg7[%c0_13, %c0_14] : memref<128x128xf32, #tpu.memory_space<vmem>>, vector<128x128xf32>
    %cst_15 = arith.constant dense<0.000000e+00> : vector<32x128xf32>
    %22 = tpu.matmul %18, %21, %cst_15 {dimension_numbers = #tpu.dot_dimension_numbers<[1], [0], [0], [1], [0, 0, 1, 1], [], []>} : vector<32x128xf32>, vector<128x128xf32>, vector<32x128xf32> -> vector<32x128xf32>
    %c0_16 = arith.constant 0 : index
    %c0_17 = arith.constant 0 : index
    %23 = vector.load %arg8[%c0_16, %c0_17] : memref<1x128xf32, #tpu.memory_space<vmem>>, vector<1x128xf32>
    %24 = vector.broadcast %23 : vector<1x128xf32> to vector<32x128xf32>
    %25 = arith.addf %22, %24 : vector<32x128xf32>
    %26 = vector.shape_cast %25 : vector<32x128xf32> to vector<2x16x128xf32>
    %c0_18 = arith.constant 0 : index
    %c0_19 = arith.constant 0 : index
    %27 = vector.load %arg9[%c0_18, %c0_19] : memref<128x128xf32, #tpu.memory_space<vmem>>, vector<128x128xf32>
    %cst_20 = arith.constant dense<0.000000e+00> : vector<16x128xf32>
    %28 = tpu.matmul %20, %27, %cst_20 {dimension_numbers = #tpu.dot_dimension_numbers<[1], [0], [0], [1], [0, 0, 1, 1], [], []>} : vector<16x128xf32>, vector<128x128xf32>, vector<16x128xf32> -> vector<16x128xf32>
    %c0_21 = arith.constant 0 : index
    %c0_22 = arith.constant 0 : index
    %29 = vector.load %arg10[%c0_21, %c0_22] : memref<1x128xf32, #tpu.memory_space<vmem>>, vector<1x128xf32>
    %30 = vector.broadcast %29 : vector<1x128xf32> to vector<16x128xf32>
    %31 = arith.addf %28, %30 : vector<16x128xf32>
    %32 = vector.shape_cast %31 : vector<16x128xf32> to vector<2x8x128xf32>
    %c0_23 = arith.constant 0 : index
    %c0_24 = arith.constant 0 : index
    %c0_25 = arith.constant 0 : index
    %33 = vector.load %arg2[%c0_23, %c0_24, %c0_25] : memref<2x16x32xf32, #tpu.memory_space<vmem>>, vector<2x16x32xf32>
    %34 = vector.shape_cast %33 : vector<2x16x32xf32> to vector<32x32xf32>
    %c0_26 = arith.constant 0 : index
    %c0_27 = arith.constant 0 : index
    %35 = vector.load %arg11[%c0_26, %c0_27] : memref<32x128xf32, #tpu.memory_space<vmem>>, vector<32x128xf32>
    %cst_28 = arith.constant dense<0.000000e+00> : vector<32x128xf32>
    %36 = tpu.matmul %34, %35, %cst_28 {dimension_numbers = #tpu.dot_dimension_numbers<[1], [0], [0], [1], [0, 0, 1, 1], [], []>} : vector<32x32xf32>, vector<32x128xf32>, vector<32x128xf32> -> vector<32x128xf32>
    %c0_29 = arith.constant 0 : index
    %c0_30 = arith.constant 0 : index
    %37 = vector.load %arg12[%c0_29, %c0_30] : memref<1x128xf32, #tpu.memory_space<vmem>>, vector<1x128xf32>
    %38 = vector.broadcast %37 : vector<1x128xf32> to vector<32x128xf32>
    %39 = arith.addf %36, %38 : vector<32x128xf32>
    %40 = vector.shape_cast %39 : vector<32x128xf32> to vector<2x16x128xf32>
    "tpu.trace_start"() <{level = 10 : i32, message = "bqe,bke->bqk"}> : () -> ()
    %cst_31 = arith.constant dense<0.000000e+00> : vector<2x8x16xf32>
    %41 = tpu.matmul %32, %26, %cst_31 {dimension_numbers = #tpu.dot_dimension_numbers<[2], [2], [1], [1], [0, 0, 0, 1, 1, 1], [0], [0]>} : vector<2x8x128xf32>, vector<2x16x128xf32>, vector<2x8x16xf32> -> vector<2x8x16xf32>
    "tpu.trace_stop"() : () -> ()
    %cst_32 = arith.constant dense<0xFF800000> : vector<2x8xf32>
    %42 = vector.multi_reduction <maximumf>, %41, %cst_32 [2] : vector<2x8x16xf32> to vector<2x8xf32>
    %43 = vector.shape_cast %42 : vector<2x8xf32> to vector<2x8x1xf32>
    %44 = vector.broadcast %43 : vector<2x8x1xf32> to vector<2x8x16xf32>
    %45 = arith.subf %41, %44 : vector<2x8x16xf32>
    %46 = math.exp %45 : vector<2x8x16xf32>
    %cst_33 = arith.constant dense<0.000000e+00> : vector<2x8xf32>
    %47 = vector.multi_reduction <add>, %46, %cst_33 [2] : vector<2x8x16xf32> to vector<2x8xf32>
    %48 = vector.shape_cast %47 : vector<2x8xf32> to vector<2x8x1xf32>
    "tpu.trace_start"() <{level = 10 : i32, message = "bqk,bke->bqe"}> : () -> ()
    %cst_34 = arith.constant dense<0.000000e+00> : vector<2x8x128xf32>
    %49 = tpu.matmul %46, %40, %cst_34 {dimension_numbers = #tpu.dot_dimension_numbers<[2], [1], [1], [2], [0, 0, 0, 1, 1, 2], [0], [0]>} : vector<2x8x16xf32>, vector<2x16x128xf32>, vector<2x8x128xf32> -> vector<2x8x128xf32>
    "tpu.trace_stop"() : () -> ()
    %50 = tpu.reciprocal %48 {approx = true} : vector<2x8x1xf32> -> vector<2x8x1xf32>
    %51 = vector.broadcast %50 : vector<2x8x1xf32> to vector<2x8x128xf32>
    %52 = arith.mulf %49, %51 : vector<2x8x128xf32>
    %c0_35 = arith.constant 0 : index
    %c0_36 = arith.constant 0 : index
    %c0_37 = arith.constant 0 : index
    %53 = vector.load %arg13[%c0_35, %c0_36, %c0_37] : memref<2x8x128xf32, #tpu.memory_space<vmem>>, vector<2x8x128xf32>
    tpu.vector_store %arg13[%c0_35, %c0_36, %c0_37], %52 {strides = array<i32>} : memref<2x8x128xf32, #tpu.memory_space<vmem>>, vector<2x8x128xf32>,
    return
  }
  func.func @transform_0(%arg0: i32) -> (i32, i32, i32) {
    %c0_i32 = arith.constant 0 : i32
    %c0_i32_0 = arith.constant 0 : i32
    %c0_i32_1 = arith.constant 0 : i32
    return %arg0, %c0_i32, %c0_i32_0 : i32, i32, i32
  }
  func.func @transform_1(%arg0: i32) -> (i32, i32, i32) {
    %c0_i32 = arith.constant 0 : i32
    %c0_i32_0 = arith.constant 0 : i32
    %c0_i32_1 = arith.constant 0 : i32
    return %arg0, %c0_i32, %c0_i32_0 : i32, i32, i32
  }
  func.func @transform_2(%arg0: i32) -> (i32, i32) {
    %c0_i32 = arith.constant 0 : i32
    %c0_i32_0 = arith.constant 0 : i32
    %c0_i32_1 = arith.constant 0 : i32
    return %c0_i32, %c0_i32_0 : i32, i32
  }
  func.func @transform_3(%arg0: i32) -> (i32, i32) {
    %c0_i32 = arith.constant 0 : i32
    %c0_i32_0 = arith.constant 0 : i32
    %c0_i32_1 = arith.constant 0 : i32
    return %c0_i32, %c0_i32_0 : i32, i32
  }
  func.func @transform_4(%arg0: i32) -> (i32, i32) {
    %c0_i32 = arith.constant 0 : i32
    %c0_i32_0 = arith.constant 0 : i32
    %c0_i32_1 = arith.constant 0 : i32
    return %c0_i32, %c0_i32_0 : i32, i32
  }
  func.func @transform_5(%arg0: i32) -> (i32, i32) {
    %c0_i32 = arith.constant 0 : i32
    %c0_i32_0 = arith.constant 0 : i32
    %c0_i32_1 = arith.constant 0 : i32
    return %c0_i32, %c0_i32_0 : i32, i32
  }
  func.func @transform_6(%arg0: i32) -> (i32, i32) {
    %c0_i32 = arith.constant 0 : i32
    %c0_i32_0 = arith.constant 0 : i32
    %c0_i32_1 = arith.constant 0 : i32
    return %c0_i32, %c0_i32_0 : i32, i32
  }
  func.func @transform_7(%arg0: i32) -> (i32, i32) {
    %c0_i32 = arith.constant 0 : i32
    %c0_i32_0 = arith.constant 0 : i32
    %c0_i32_1 = arith.constant 0 : i32
    return %c0_i32, %c0_i32_0 : i32, i32
  }
  func.func @transform_8(%arg0: i32) -> (i32, i32) {
    %c0_i32 = arith.constant 0 : i32
    %c0_i32_0 = arith.constant 0 : i32
    %c0_i32_1 = arith.constant 0 : i32
    return %c0_i32, %c0_i32_0 : i32, i32
  }
  func.func @transform_9(%arg0: i32) -> (i32, i32) {
    %c0_i32 = arith.constant 0 : i32
    %c0_i32_0 = arith.constant 0 : i32
    %c0_i32_1 = arith.constant 0 : i32
    return %c0_i32, %c0_i32_0 : i32, i32
  }
  func.func @transform_10(%arg0: i32) -> (i32, i32) {
    %c0_i32 = arith.constant 0 : i32
    %c0_i32_0 = arith.constant 0 : i32
    %c0_i32_1 = arith.constant 0 : i32
    return %c0_i32, %c0_i32_0 : i32, i32
  }
  func.func @transform_11(%arg0: i32) -> (i32, i32) {
    %c0_i32 = arith.constant 0 : i32
    %c0_i32_0 = arith.constant 0 : i32
    %c0_i32_1 = arith.constant 0 : i32
    return %c0_i32, %c0_i32_0 : i32, i32
  }
  func.func @transform_12(%arg0: i32) -> (i32, i32, i32) {
    %c0_i32 = arith.constant 0 : i32
    %c0_i32_0 = arith.constant 0 : i32
    %c0_i32_1 = arith.constant 0 : i32
    return %arg0, %c0_i32, %c0_i32_0 : i32, i32, i32
  }
}

</mosaic_0001>

<llo_original>
// kernel: tpu_custom_call.1
$region0: #{tpu_custom_call.1}
  #allocation0 [shape = 'u32[]', space=smem, size = 0x4, offset = 0x4, fixed_abs, tag = 'smem constant byte address 0x4 - core index']
  #allocation1 [shape = 'u32[72,128]{1,0:T(1,128)}', space=vmem, size = 0x9000, scoped, tag = 'internal scratch']
  %s0 = inlined_call_operand.vmem [shape: f32[2,24,8], index: 0, kind: input, shape index: {}]
  %s1 = inlined_call_operand.vmem [shape: f32[2,16,32], index: 1, kind: input, shape index: {}]
  %s2 = inlined_call_operand.hbm [shape: f32[8,128], index: 2, kind: input, shape index: {}]
  %s3 = inlined_call_operand.vmem [shape: f32[1,128], index: 3, kind: input, shape index: {}]
  %s4 = inlined_call_operand.hbm [shape: f32[128,128], index: 4, kind: input, shape index: {}]
  %s5 = inlined_call_operand.vmem [shape: f32[1,128], index: 5, kind: input, shape index: {}]
  %s6 = inlined_call_operand.hbm [shape: f32[128,128], index: 6, kind: input, shape index: {}]
  %s7 = inlined_call_operand.vmem [shape: f32[1,128], index: 7, kind: input, shape index: {}]
  %s8 = inlined_call_operand.hbm [shape: f32[128,128], index: 8, kind: input, shape index: {}]
  %s9 = inlined_call_operand.vmem [shape: f32[1,128], index: 9, kind: input, shape index: {}]
  %s10 = inlined_call_operand.vmem [shape: f32[32,128], index: 10, kind: input, shape index: {}]
  %s11 = inlined_call_operand.vmem [shape: f32[1,128], index: 11, kind: input, shape index: {}]
  %s12 = inlined_call_operand.hbm [shape: f32[2,8,128], index: 12, kind: output, shape index: {}]
  %s13 = sld [smem:[#allocation0]]
  $region74: #{tpu_custom_call.1} parent=0
    _
  %s15 = ssub.s32 1, %s13
  %s16 = scalar_select 0, %s15, %s13
  $region1: #{tpu_custom_call.1} parent=0
    #allocation2 [shape = 'u8[4096]{0}', space=vmem, size = 0x1000, scoped, tag = 'input window, operand 2, single buffered']
    #allocation3 [shape = 's32[1]{0}', space=sflag, size = 0x4, scoped, tag = 'scoped memory for tpu_custom_call.1']
    #allocation4 [shape = 's32[1]{0}', space=sflag, size = 0x4, scoped, tag = 'scoped memory for tpu_custom_call.1']
    #allocation5 [shape = 'u8[65536]{0}', space=vmem, size = 0x10000, scoped, tag = 'input window, operand 4, single buffered']
    #allocation6 [shape = 's32[1]{0}', space=sflag, size = 0x4, scoped, tag = 'scoped memory for tpu_custom_call.1']
    #allocation7 [shape = 'u8[65536]{0}', space=vmem, size = 0x10000, scoped, tag = 'input window, operand 6, single buffered']
    #allocation8 [shape = 'u8[65536]{0}', space=vmem, size = 0x10000, scoped, tag = 'input window, operand 8, single buffered']
    #allocation9 [shape = 's32[1]{0}', space=sflag, size = 0x4, scoped, tag = 'scoped memory for tpu_custom_call.1']
    #allocation10 [shape = 'u8[8192]{0}', space=vmem, size = 0x2000, scoped, tag = 'output window, operand 0, single buffered']
    %17 = vsyncpa [#allocation3], 0
    %18 = vsyncpa [#allocation6], 0
    %19 = vsyncpa [#allocation9], 0
    %20 = vsyncpa [#allocation4], 0
    // Predicated region
    $region2: #{tpu_custom_call.1} parent=1 // pred_check
      _
    $region3: #{tpu_custom_call.1} parent=1 // pred_check_branch
      %22 = sbr.rel (0) target = $region5
    $region4: #{tpu_custom_call.1} parent=1 // pred_region
      _
    $region5: #{tpu_custom_call.1} parent=1 // pred_fallthru
      _
    // Predicated region
    $region6: #{tpu_custom_call.1} parent=1 // pred_check
      _
    $region7: #{tpu_custom_call.1} parent=1 // pred_check_branch
      %24 = sbr.rel (0) target = $region9
    $region8: #{tpu_custom_call.1} parent=1 // pred_region
      _
    $region9: #{tpu_custom_call.1} parent=1 // pred_fallthru
      _
    // Predicated region
    $region10: #{tpu_custom_call.1} parent=1 // pred_check
      _
    $region11: #{tpu_custom_call.1} parent=1 // pred_check_branch
      %26 = sbr.rel (0) target = $region13
    $region12: #{tpu_custom_call.1} parent=1 // pred_region
      %28 = vsyncadd [#allocation3], 0
      %s30 = sshll.u32 %s2, 4
      %s31 = int_to_ptr.hbm [resolvable:$true] %s30
      %s32 = sshll.u32 [#allocation2], 4
      %s33 = int_to_ptr.vmem [resolvable:$true] %s32
      %35 = dma.hbm_to_vmem [thread:$0]  %s31, 128, %s33, [#allocation3]
    $region13: #{tpu_custom_call.1} parent=1 // pred_fallthru
      _
    // Predicated region
    $region14: #{tpu_custom_call.1} parent=1 // pred_check
      _
    $region15: #{tpu_custom_call.1} parent=1 // pred_check_branch
      %37 = sbr.rel (0) target = $region17
    $region16: #{tpu_custom_call.1} parent=1 // pred_region
      _
    $region17: #{tpu_custom_call.1} parent=1 // pred_fallthru
      _
    // Predicated region
    $region18: #{tpu_custom_call.1} parent=1 // pred_check
      _
    $region19: #{tpu_custom_call.1} parent=1 // pred_check_branch
      %39 = sbr.rel (0) target = $region21
    $region20: #{tpu_custom_call.1} parent=1 // pred_region
      %41 = vsyncadd [#allocation6], 0
      %s42 = sshll.u32 %s4, 4
      %s43 = int_to_ptr.hbm [resolvable:$true] %s42
      %s44 = sshll.u32 [#allocation5], 4
      %s45 = int_to_ptr.vmem [resolvable:$true] %s44
      %50 = dma.hbm_to_vmem [thread:$0]  %s43, 2048, %s45, [#allocation6], 128, 128, 8
    $region21: #{tpu_custom_call.1} parent=1 // pred_fallthru
      _
    // Predicated region
    $region22: #{tpu_custom_call.1} parent=1 // pred_check
      _
    $region23: #{tpu_custom_call.1} parent=1 // pred_check_branch
      %52 = sbr.rel (0) target = $region25
    $region24: #{tpu_custom_call.1} parent=1 // pred_region
      _
    $region25: #{tpu_custom_call.1} parent=1 // pred_fallthru
      _
    // Predicated region
    $region26: #{tpu_custom_call.1} parent=1 // pred_check
      _
    $region27: #{tpu_custom_call.1} parent=1 // pred_check_branch
      %54 = sbr.rel (0) target = $region29
    $region28: #{tpu_custom_call.1} parent=1 // pred_region
      %56 = vsyncadd [#allocation6], 0
      %s57 = sshll.u32 %s6, 4
      %s58 = int_to_ptr.hbm [resolvable:$true] %s57
      %s59 = sshll.u32 [#allocation7], 4
      %s60 = int_to_ptr.vmem [resolvable:$true] %s59
      %65 = dma.hbm_to_vmem [thread:$0]  %s58, 2048, %s60, [#allocation6], 128, 128, 8
    $region29: #{tpu_custom_call.1} parent=1 // pred_fallthru
      _
    // Predicated region
    $region30: #{tpu_custom_call.1} parent=1 // pred_check
      _
    $region31: #{tpu_custom_call.1} parent=1 // pred_check_branch
      %67 = sbr.rel (0) target = $region33
    $region32: #{tpu_custom_call.1} parent=1 // pred_region
      _
    $region33: #{tpu_custom_call.1} parent=1 // pred_fallthru
      _
    // Predicated region
    $region34: #{tpu_custom_call.1} parent=1 // pred_check
      _
    $region35: #{tpu_custom_call.1} parent=1 // pred_check_branch
      %69 = sbr.rel (0) target = $region37
    $region36: #{tpu_custom_call.1} parent=1 // pred_region
      %71 = vsyncadd [#allocation9], 0
      %s72 = sshll.u32 %s8, 4
      %s73 = int_to_ptr.hbm [resolvable:$true] %s72
      %s74 = sshll.u32 [#allocation8], 4
      %s75 = int_to_ptr.vmem [resolvable:$true] %s74
      %80 = dma.hbm_to_vmem [thread:$0]  %s73, 2048, %s75, [#allocation9], 128, 128, 8
    $region37: #{tpu_custom_call.1} parent=1 // pred_fallthru
      _
    // Predicated region
    $region38: #{tpu_custom_call.1} parent=1 // pred_check
      _
    $region39: #{tpu_custom_call.1} parent=1 // pred_check_branch
      %82 = sbr.rel (0) target = $region41
    $region40: #{tpu_custom_call.1} parent=1 // pred_region
      _
    $region41: #{tpu_custom_call.1} parent=1 // pred_fallthru
      _
    // Predicated region
    $region42: #{tpu_custom_call.1} parent=1 // pred_check
      _
    $region43: #{tpu_custom_call.1} parent=1 // pred_check_branch
      %84 = sbr.rel (0) target = $region45
    $region44: #{tpu_custom_call.1} parent=1 // pred_region
      _
    $region45: #{tpu_custom_call.1} parent=1 // pred_fallthru
      _
    // Predicated region
    $region46: #{tpu_custom_call.1} parent=1 // pred_check
      _
    $region47: #{tpu_custom_call.1} parent=1 // pred_check_branch
      %86 = sbr.rel (0) target = $region49
    $region48: #{tpu_custom_call.1} parent=1 // pred_region
      _
    $region49: #{tpu_custom_call.1} parent=1 // pred_fallthru
      _
    // Predicated region
    $region50: #{tpu_custom_call.1} parent=1 // pred_check
      _
    $region51: #{tpu_custom_call.1} parent=1 // pred_check_branch
      %88 = sbr.rel (0) target = $region53
    $region52: #{tpu_custom_call.1} parent=1 // pred_region
      %90 = dma.done [#allocation3], 128
    $region53: #{tpu_custom_call.1} parent=1 // pred_fallthru
      _
    // Predicated region
    $region54: #{tpu_custom_call.1} parent=1 // pred_check
      _
    $region55: #{tpu_custom_call.1} parent=1 // pred_check_branch
      %92 = sbr.rel (0) target = $region57
    $region56: #{tpu_custom_call.1} parent=1 // pred_region
      %94 = dma.done [#allocation6], 2048
    $region57: #{tpu_custom_call.1} parent=1 // pred_fallthru
      _
    // Predicated region
    $region58: #{tpu_custom_call.1} parent=1 // pred_check
      _
    $region59: #{tpu_custom_call.1} parent=1 // pred_check_branch
      %96 = sbr.rel (0) target = $region61
    $region60: #{tpu_custom_call.1} parent=1 // pred_region
      %98 = dma.done [#allocation6], 2048
    $region61: #{tpu_custom_call.1} parent=1 // pred_fallthru
      _
    // Predicated region
    $region62: #{tpu_custom_call.1} parent=1 // pred_check
      _
    $region63: #{tpu_custom_call.1} parent=1 // pred_check_branch
      %100 = sbr.rel (0) target = $region65
    $region64: #{tpu_custom_call.1} parent=1 // pred_region
      %102 = dma.done [#allocation9], 2048
    $region65: #{tpu_custom_call.1} parent=1 // pred_fallthru
      _
    %v103 = vld [vmem:[%s0] sm:$0xff]
    %v104 = vld [vmem:[%s0 + $0x8] sm:$0xff]
    %v105 = vld [vmem:[%s0 + $0x10] sm:$0xff]
    %v106 = vld [vmem:[%s0 + $0x18] sm:$0xff]
    %v107 = vld [vmem:[%s0 + $0x20] sm:$0xff]
    %v108 = vld [vmem:[%s0 + $0x28] sm:$0xff]
    %v109 = vld [vmem:[#allocation2] sm:$0xff]
    %v110 = vld [vmem:[%s3] sm:$0x1]
    %v112 = vperm.slane %v110, 0
    %vm114 = vcmask 64512
    %v116 = vsel %vm114, %v103, 0
    %v119 = vsel %vm114, %v104, 0
    %v122 = vsel %vm114, %v105, 0
    %v125 = vsel %vm114, %v106, 0
    %v128 = vsel %vm114, %v107, 0
    %v131 = vsel %vm114, %v108, 0
    %133 = vmatpush.msra.mxu0 0.0
    %134 = vmatpush.msra.mxu0 0.0
    %135 = vmatpush.msra.mxu0 0.0
    %136 = vmatpush.msra.mxu0 0.0
    %137 = vmatpush.msra.mxu0 0.0
    %138 = vmatpush.msra.mxu0 0.0
    %139 = vmatpush.msra.mxu0 0.0
    %140 = vmatpush.msra.mxu0 0.0
    %141 = vmatpush.msra.mxu0 0.0
    %142 = vmatpush.msra.mxu0 0.0
    %143 = vmatpush.msra.mxu0 0.0
    %144 = vmatpush.msra.mxu0 0.0
    %145 = vmatpush.msra.mxu0 0.0
    %146 = vmatpush.msra.mxu0 0.0
    %147 = vmatpush.msra.mxu0 0.0
    %148 = vmatpush.msra.mxu0 %v109
    %149 = vmatmul.f32.gmra.mxu0 %v116
    %v150 = vpop.f32.mrf.mxu0
    %v151 = vadd.f32 %v112, %v150
    %152 = vmatmul.f32.gmra.mxu0 %v119
    %v153 = vpop.f32.mrf.mxu0
    %v154 = vadd.f32 %v112, %v153
    %155 = vmatmul.f32.gmra.mxu0 %v122
    %v156 = vpop.f32.mrf.mxu0
    %v157 = vadd.f32 %v112, %v156
    %158 = vmatmul.f32.gmra.mxu0 %v125
    %v159 = vpop.f32.mrf.mxu0
    %v160 = vadd.f32 %v112, %v159
    %161 = vmatmul.f32.gmra.mxu0 %v128
    %v162 = vpop.f32.mrf.mxu0
    %v163 = vadd.f32 %v112, %v162
    %164 = vmatmul.f32.gmra.mxu0 %v131
    %v165 = vpop.f32.mrf.mxu0
    %v166 = vadd.f32 %v112, %v165
    %167 = vdwg.mxu0
    %v168 = vmax.f32 %v151, 0.0
    %v169 = vmax.f32 %v154, 0.0
    %v170 = vmax.f32 %v157, 0.0
    %v171 = vmax.f32 %v160, 0.0
    %v172 = vmax.f32 %v163, 0.0
    %v173 = vmax.f32 %v166, 0.0
    %v174 = vld [vmem:[#allocation5] sm:$0xff]
    %v175 = vld [vmem:[#allocation5 + $0x8] sm:$0xff]
    %v176 = vld [vmem:[#allocation5 + $0x10] sm:$0xff]
    %v177 = vld [vmem:[#allocation5 + $0x18] sm:$0xff]
    %v178 = vld [vmem:[#allocation5 + $0x20] sm:$0xff]
    %v179 = vld [vmem:[#allocation5 + $0x28] sm:$0xff]
    %v180 = vld [vmem:[#allocation5 + $0x30] sm:$0xff]
    %v181 = vld [vmem:[#allocation5 + $0x38] sm:$0xff]
    %v182 = vld [vmem:[#allocation5 + $0x40] sm:$0xff]
    %v183 = vld [vmem:[#allocation5 + $0x48] sm:$0xff]
    %v184 = vld [vmem:[#allocation5 + $0x50] sm:$0xff]
    %v185 = vld [vmem:[#allocation5 + $0x58] sm:$0xff]
    %v186 = vld [vmem:[#allocation5 + $0x60] sm:$0xff]
    %v187 = vld [vmem:[#allocation5 + $0x68] sm:$0xff]
    %v188 = vld [vmem:[#allocation5 + $0x70] sm:$0xff]
    %v189 = vld [vmem:[#allocation5 + $0x78] sm:$0xff]
    %v190 = vld [vmem:[%s5] sm:$0x1]
    %v192 = vperm.slane %v190, 0
    %194 = vmatpush.msra.mxu0 %v189
    %195 = vmatpush.msra.mxu0 %v188
    %196 = vmatpush.msra.mxu0 %v187
    %197 = vmatpush.msra.mxu0 %v186
    %198 = vmatpush.msra.mxu0 %v185
    %199 = vmatpush.msra.mxu0 %v184
    %200 = vmatpush.msra.mxu0 %v183
    %201 = vmatpush.msra.mxu0 %v182
    %202 = vmatpush.msra.mxu0 %v181
    %203 = vmatpush.msra.mxu0 %v180
    %204 = vmatpush.msra.mxu0 %v179
    %205 = vmatpush.msra.mxu0 %v178
    %206 = vmatpush.msra.mxu0 %v177
    %207 = vmatpush.msra.mxu0 %v176
    %208 = vmatpush.msra.mxu0 %v175
    %209 = vmatpush.msra.mxu0 %v174
    %210 = vmatmul.f32.gmra.mxu0 %v168
    %v211 = vpop.f32.mrf.mxu0
    %v212 = vadd.f32 %v192, %v211
    %213 = vmatmul.f32.gmra.mxu0 %v169
    %v214 = vpop.f32.mrf.mxu0
    %v215 = vadd.f32 %v192, %v214
    %216 = vmatmul.f32.gmra.mxu0 %v170
    %v217 = vpop.f32.mrf.mxu0
    %v218 = vadd.f32 %v192, %v217
    %219 = vmatmul.f32.gmra.mxu0 %v171
    %v220 = vpop.f32.mrf.mxu0
    %v221 = vadd.f32 %v192, %v220
    %222 = vmatmul.f32.gmra.mxu0 %v172
    %v223 = vpop.f32.mrf.mxu0
    %v224 = vadd.f32 %v192, %v223
    %225 = vmatmul.f32.gmra.mxu0 %v173
    %v226 = vpop.f32.mrf.mxu0
    %v227 = vadd.f32 %v192, %v226
    %228 = vdwg.mxu0
    %v229 = vmax.f32 %v212, 0.0
    %v230 = vmax.f32 %v215, 0.0
    %v231 = vmax.f32 %v218, 0.0
    %v232 = vmax.f32 %v221, 0.0
    %v233 = vmax.f32 %v224, 0.0
    %v234 = vmax.f32 %v227, 0.0
    %v235 = vld [vmem:[#allocation7] sm:$0xff]
    %v236 = vld [vmem:[#allocation7 + $0x8] sm:$0xff]
    %v237 = vld [vmem:[#allocation7 + $0x10] sm:$0xff]
    %v238 = vld [vmem:[#allocation7 + $0x18] sm:$0xff]
    %v239 = vld [vmem:[#allocation7 + $0x20] sm:$0xff]
    %v240 = vld [vmem:[#allocation7 + $0x28] sm:$0xff]
    %v241 = vld [vmem:[#allocation7 + $0x30] sm:$0xff]
    %v242 = vld [vmem:[#allocation7 + $0x38] sm:$0xff]
    %v243 = vld [vmem:[#allocation7 + $0x40] sm:$0xff]
    %v244 = vld [vmem:[#allocation7 + $0x48] sm:$0xff]
    %v245 = vld [vmem:[#allocation7 + $0x50] sm:$0xff]
    %v246 = vld [vmem:[#allocation7 + $0x58] sm:$0xff]
    %v247 = vld [vmem:[#allocation7 + $0x60] sm:$0xff]
    %v248 = vld [vmem:[#allocation7 + $0x68] sm:$0xff]
    %v249 = vld [vmem:[#allocation7 + $0x70] sm:$0xff]
    %v250 = vld [vmem:[#allocation7 + $0x78] sm:$0xff]
    %v251 = vld [vmem:[%s7] sm:$0x1]
    %v253 = vperm.slane %v251, 0
    %255 = vmatpush.msra.mxu0 %v250
    %256 = vmatpush.msra.mxu0 %v249
    %257 = vmatpush.msra.mxu0 %v248
    %258 = vmatpush.msra.mxu0 %v247
    %259 = vmatpush.msra.mxu0 %v246
    %260 = vmatpush.msra.mxu0 %v245
    %261 = vmatpush.msra.mxu0 %v244
    %262 = vmatpush.msra.mxu0 %v243
    %263 = vmatpush.msra.mxu0 %v242
    %264 = vmatpush.msra.mxu0 %v241
    %265 = vmatpush.msra.mxu0 %v240
    %266 = vmatpush.msra.mxu0 %v239
    %267 = vmatpush.msra.mxu0 %v238
    %268 = vmatpush.msra.mxu0 %v237
    %269 = vmatpush.msra.mxu0 %v236
    %270 = vmatpush.msra.mxu0 %v235
    %271 = vmatmul.f32.gmra.mxu0 %v229
    %v272 = vpop.f32.mrf.mxu0
    %v273 = vadd.f32 %v253, %v272
    %274 = vmatmul.f32.gmra.mxu0 %v230
    %v275 = vpop.f32.mrf.mxu0
    %v276 = vadd.f32 %v253, %v275
    %277 = vmatmul.f32.gmra.mxu0 %v232
    %v278 = vpop.f32.mrf.mxu0
    %v279 = vadd.f32 %v253, %v278
    %280 = vmatmul.f32.gmra.mxu0 %v233
    %v281 = vpop.f32.mrf.mxu0
    %v282 = vadd.f32 %v253, %v281
    %283 = vdwg.mxu0
    %v284 = vld [vmem:[#allocation8] sm:$0xff]
    %v285 = vld [vmem:[#allocation8 + $0x8] sm:$0xff]
    %v286 = vld [vmem:[#allocation8 + $0x10] sm:$0xff]
    %v287 = vld [vmem:[#allocation8 + $0x18] sm:$0xff]
    %v288 = vld [vmem:[#allocation8 + $0x20] sm:$0xff]
    %v289 = vld [vmem:[#allocation8 + $0x28] sm:$0xff]
    %v290 = vld [vmem:[#allocation8 + $0x30] sm:$0xff]
    %v291 = vld [vmem:[#allocation8 + $0x38] sm:$0xff]
    %v292 = vld [vmem:[#allocation8 + $0x40] sm:$0xff]
    %v293 = vld [vmem:[#allocation8 + $0x48] sm:$0xff]
    %v294 = vld [vmem:[#allocation8 + $0x50] sm:$0xff]
    %v295 = vld [vmem:[#allocation8 + $0x58] sm:$0xff]
    %v296 = vld [vmem:[#allocation8 + $0x60] sm:$0xff]
    %v297 = vld [vmem:[#allocation8 + $0x68] sm:$0xff]
    %v298 = vld [vmem:[#allocation8 + $0x70] sm:$0xff]
    %v299 = vld [vmem:[#allocation8 + $0x78] sm:$0xff]
    %v300 = vld [vmem:[%s9] sm:$0x1]
    %v302 = vperm.slane %v300, 0
    %304 = vmatpush.msra.mxu0 %v299
    %305 = vmatpush.msra.mxu0 %v298
    %306 = vmatpush.msra.mxu0 %v297
    %307 = vmatpush.msra.mxu0 %v296
    %308 = vmatpush.msra.mxu0 %v295
    %309 = vmatpush.msra.mxu0 %v294
    %310 = vmatpush.msra.mxu0 %v293
    %311 = vmatpush.msra.mxu0 %v292
    %312 = vmatpush.msra.mxu0 %v291
    %313 = vmatpush.msra.mxu0 %v290
    %314 = vmatpush.msra.mxu0 %v289
    %315 = vmatpush.msra.mxu0 %v288
    %316 = vmatpush.msra.mxu0 %v287
    %317 = vmatpush.msra.mxu0 %v286
    %318 = vmatpush.msra.mxu0 %v285
    %319 = vmatpush.msra.mxu0 %v284
    %320 = vmatmul.f32.gmra.mxu0 %v231
    %v321 = vpop.f32.mrf.mxu0
    %v322 = vadd.f32 %v302, %v321
    %323 = vmatmul.f32.gmra.mxu0 %v234
    %v324 = vpop.f32.mrf.mxu0
    %v325 = vadd.f32 %v302, %v324
    %326 = vdwg.mxu0
    %v327 = vld [vmem:[%s1] sm:$0xff]
    %v328 = vld [vmem:[%s1 + $0x8] sm:$0xff]
    %v329 = vld [vmem:[%s1 + $0x10] sm:$0xff]
    %v330 = vld [vmem:[%s1 + $0x18] sm:$0xff]
    %v331 = vld [vmem:[%s10] sm:$0xff]
    %v332 = vld [vmem:[%s10 + $0x8] sm:$0xff]
    %v333 = vld [vmem:[%s10 + $0x10] sm:$0xff]
    %v334 = vld [vmem:[%s10 + $0x18] sm:$0xff]
    %v335 = vld [vmem:[%s11] sm:$0x1]
    %v337 = vperm.slane %v335, 0
    %vm339 = vcmask 261120
    %v341 = vsel %vm339, %v327, 0
    %v344 = vsel %vm339, %v328, 0
    %v347 = vsel %vm339, %v329, 0
    %v350 = vsel %vm339, %v330, 0
    %352 = vmatpush.msra.mxu0 0.0
    %353 = vmatpush.msra.mxu0 0.0
    %354 = vmatpush.msra.mxu0 0.0
    %355 = vmatpush.msra.mxu0 0.0
    %356 = vmatpush.msra.mxu0 0.0
    %357 = vmatpush.msra.mxu0 0.0
    %358 = vmatpush.msra.mxu0 0.0
    %359 = vmatpush.msra.mxu0 0.0
    %360 = vmatpush.msra.mxu0 0.0
    %361 = vmatpush.msra.mxu0 0.0
    %362 = vmatpush.msra.mxu0 0.0
    %363 = vmatpush.msra.mxu0 0.0
    %364 = vmatpush.msra.mxu0 %v334
    %365 = vmatpush.msra.mxu0 %v333
    %366 = vmatpush.msra.mxu0 %v332
    %367 = vmatpush.msra.mxu0 %v331
    %368 = vmatmul.f32.gmra.mxu0 %v341
    %v369 = vpop.f32.mrf.mxu0
    %v370 = vadd.f32 %v337, %v369
    %371 = vmatmul.f32.gmra.mxu0 %v344
    %v372 = vpop.f32.mrf.mxu0
    %v373 = vadd.f32 %v337, %v372
    %374 = vmatmul.f32.gmra.mxu0 %v347
    %v375 = vpop.f32.mrf.mxu0
    %v376 = vadd.f32 %v337, %v375
    %377 = vmatmul.f32.gmra.mxu0 %v350
    %v378 = vpop.f32.mrf.mxu0
    %v379 = vadd.f32 %v337, %v378
    %380 = vdwg.mxu0
    %381 = vmatpush.xpose.msra.mxu0 0.0
    %382 = vmatpush.xpose.msra.mxu0 0.0
    %383 = vmatpush.xpose.msra.mxu0 0.0
    %384 = vmatpush.xpose.msra.mxu0 0.0
    %385 = vmatpush.xpose.msra.mxu0 0.0
    %386 = vmatpush.xpose.msra.mxu0 0.0
    %387 = vmatpush.xpose.msra.mxu0 0.0
    %388 = vmatpush.xpose.msra.mxu0 0.0
    %389 = vmatpush.xpose.msra.mxu0 0.0
    %390 = vmatpush.xpose.msra.mxu0 0.0
    %391 = vmatpush.xpose.msra.mxu0 0.0
    %392 = vmatpush.xpose.msra.mxu0 0.0
    %393 = vmatpush.xpose.msra.mxu0 0.0
    %394 = vmatpush.xpose.msra.mxu0 0.0
    %395 = vmatpush.xpose.msra.mxu0 %v276
    %396 = vmatpush.xpose.msra.mxu0 %v273
    %397 = vmatmul.f32.gmra.mxu0 %v322
    %v398 = vpop.f32.mrf.mxu0
    %v399 = vadd.f32 0.0, %v398
    %400 = vdwg.mxu0
    %401 = vmatpush.xpose.msra.mxu0 0.0
    %402 = vmatpush.xpose.msra.mxu0 0.0
    %403 = vmatpush.xpose.msra.mxu0 0.0
    %404 = vmatpush.xpose.msra.mxu0 0.0
    %405 = vmatpush.xpose.msra.mxu0 0.0
    %406 = vmatpush.xpose.msra.mxu0 0.0
    %407 = vmatpush.xpose.msra.mxu0 0.0
    %408 = vmatpush.xpose.msra.mxu0 0.0
    %409 = vmatpush.xpose.msra.mxu0 0.0
    %410 = vmatpush.xpose.msra.mxu0 0.0
    %411 = vmatpush.xpose.msra.mxu0 0.0
    %412 = vmatpush.xpose.msra.mxu0 0.0
    %413 = vmatpush.xpose.msra.mxu0 0.0
    %414 = vmatpush.xpose.msra.mxu0 0.0
    %415 = vmatpush.xpose.msra.mxu0 %v282
    %416 = vmatpush.xpose.msra.mxu0 %v279
    %417 = vmatmul.f32.gmra.mxu0 %v325
    %v418 = vpop.f32.mrf.mxu0
    %v419 = vadd.f32 0.0, %v418
    %420 = vdwg.mxu0
    %vm421 = vcmask 130048
    %v422 = vsel %vm421, %v399, -inf
    %423 = vmax.xlane.f32.xlu0 %v422
    %v424 = vpop.xlane.xlu0 %423
    %v425 = vsel %vm421, %v419, -inf
    %426 = vmax.xlane.f32.xlu0 %v425
    %v427 = vpop.xlane.xlu0 %426
    %v428 = vsub.f32 %v399, %v424
    %v429 = vsub.f32 %v419, %v427
    %v430 = vmul.f32 %v428, 1.442695
    %v431 = vpow.pop %v430
    %v432 = vmul.f32 %v429, 1.442695
    %v433 = vpow.pop %v432
    %v434 = vsel %vm421, %v431, 0.0
    %435 = vadd.xlane.f32.xlu0 %v434
    %v436 = vpop.xlane.xlu0 %435
    %v437 = vsel %vm421, %v433, 0.0
    %438 = vadd.xlane.f32.xlu0 %v437
    %v439 = vpop.xlane.xlu0 %438
    %v441 = vsel %vm421, %v431, 0
    %443 = vmatpush.msra.mxu0 0.0
    %444 = vmatpush.msra.mxu0 0.0
    %445 = vmatpush.msra.mxu0 0.0
    %446 = vmatpush.msra.mxu0 0.0
    %447 = vmatpush.msra.mxu0 0.0
    %448 = vmatpush.msra.mxu0 0.0
    %449 = vmatpush.msra.mxu0 0.0
    %450 = vmatpush.msra.mxu0 0.0
    %451 = vmatpush.msra.mxu0 0.0
    %452 = vmatpush.msra.mxu0 0.0
    %453 = vmatpush.msra.mxu0 0.0
    %454 = vmatpush.msra.mxu0 0.0
    %455 = vmatpush.msra.mxu0 0.0
    %456 = vmatpush.msra.mxu0 0.0
    %457 = vmatpush.msra.mxu0 %v373
    %458 = vmatpush.msra.mxu0 %v370
    %459 = vmatmul.f32.gmra.mxu0 %v441
    %v460 = vpop.f32.mrf.mxu0
    %v461 = vadd.f32 0.0, %v460
    %462 = vdwg.mxu0
    %v464 = vsel %vm421, %v433, 0
    %466 = vmatpush.msra.mxu0 0.0
    %467 = vmatpush.msra.mxu0 0.0
    %468 = vmatpush.msra.mxu0 0.0
    %469 = vmatpush.msra.mxu0 0.0
    %470 = vmatpush.msra.mxu0 0.0
    %471 = vmatpush.msra.mxu0 0.0
    %472 = vmatpush.msra.mxu0 0.0
    %473 = vmatpush.msra.mxu0 0.0
    %474 = vmatpush.msra.mxu0 0.0
    %475 = vmatpush.msra.mxu0 0.0
    %476 = vmatpush.msra.mxu0 0.0
    %477 = vmatpush.msra.mxu0 0.0
    %478 = vmatpush.msra.mxu0 0.0
    %479 = vmatpush.msra.mxu0 0.0
    %480 = vmatpush.msra.mxu0 %v379
    %481 = vmatpush.msra.mxu0 %v376
    %482 = vmatmul.f32.gmra.mxu0 %v464
    %v483 = vpop.f32.mrf.mxu0
    %v484 = vadd.f32 0.0, %v483
    %485 = vdwg.mxu0
    %v486 = vrcp.pop %v436
    %v487 = vrcp.pop %v439
    %v488 = vmul.f32 %v461, %v486
    %v489 = vmul.f32 %v484, %v487
    %490 = vst [vmem:[#allocation10] sm:$0xff] %v488
    %491 = vst [vmem:[#allocation10 + $0x8] sm:$0xff] %v489
    // Predicated region
    $region66: #{tpu_custom_call.1} parent=1 // pred_check
      _
    $region67: #{tpu_custom_call.1} parent=1 // pred_check_branch
      %493 = sbr.rel (0) target = $region69
    $region68: #{tpu_custom_call.1} parent=1 // pred_region
      %495 = vsyncadd [#allocation4], 0
      %s496 = sshll.u32 [#allocation10], 4
      %s497 = int_to_ptr.vmem [resolvable:$true] %s496
      %s498 = sshll.u32 %s12, 4
      %s499 = int_to_ptr.hbm [resolvable:$true] %s498
      %504 = dma.vmem_to_hbm [thread:$0]  %s497, 256, %s499, [#allocation4], 128, 128, 8
    $region69: #{tpu_custom_call.1} parent=1 // pred_fallthru
      _
    // Predicated region
    $region70: #{tpu_custom_call.1} parent=1 // pred_check
      _
    $region71: #{tpu_custom_call.1} parent=1 // pred_check_branch
      %506 = sbr.rel (0) target = $region73
    $region72: #{tpu_custom_call.1} parent=1 // pred_region
      %508 = dma.done [#allocation4], 256
    $region73: #{tpu_custom_call.1} parent=1 // pred_fallthru
      _
    %509 = vsyncpa [#allocation3], 1
    %510 = vsyncpa [#allocation6], 1
    %511 = vsyncpa [#allocation9], 1
    %512 = vsyncpa [#allocation4], 1

</llo_original>
